<compile_context>
chip_gen: v7x
topology: tpu7x:2x2x1
jax: 0.10.0
libtpu: 0.0.40
codegen_flags: <defaults>
</compile_context>

<pallas_src>
import jax
import jax.numpy as jnp
from jax.experimental import pallas as pl
from jax.experimental.pallas import tpu as pltpu

_HIGHEST = jax.lax.Precision.HIGHEST


# --------------------------------------------------------------------------
# Kernels
# --------------------------------------------------------------------------
def _softmax_over_batch(energies):
    """energies: (B, T). Softmax over axis=0 (batch / sublane axis), lane-dense in T.

    Equivalent to torch: energies.t() -> softmax(dim=1)."""
    m = jnp.max(energies, axis=0, keepdims=True)
    p = jnp.exp(energies - m)
    denom = jnp.sum(p, axis=0, keepdims=True)
    return p * pl.reciprocal(denom, approx=True)


def _score_kernel(q_ref, hb_ref, enc_ref, out_ref):
    # 'dot' and 'general' collapse to the same score:
    #   energies[b, s] = sum_h q[b, h] * enc[b, s, h] + hb[b]
    # with q = hidden ('dot') or hidden @ W ('general', hoisted to the wrapper)
    # and  hb = hidden @ bias ('general') or 0 ('dot').
    q3 = q_ref[...]                                        # (B, 1, H)
    enc = enc_ref[...]                                     # (B, TS, H)
    e = jnp.einsum('bqh,bkh->bqk', q3, enc,
                   preferred_element_type=jnp.float32,
                   precision=_HIGHEST)                     # (B, 1, TS) on MXU — no (B,TS,H) temp
    energies = e[:, 0, :] + hb_ref[...]                    # (B, TS)
    out_ref[...] = _softmax_over_batch(energies)


def _concat_scores(enc_c, hid_proj, w_enc_t, v_b):
    # enc_c: (B, TC, H); hid_proj: (B, 1, H) (includes bias); w_enc_t: (H, H); v_b: (B, 1, H)
    B, TC, H = enc_c.shape
    proj = jnp.dot(enc_c.reshape(B * TC, H), w_enc_t,
                   preferred_element_type=jnp.float32,
                   precision=_HIGHEST)                     # one flattened (B*TC,H)x(H,H) MXU matmul
    energy = jnp.tanh(proj.reshape(B, TC, H) + hid_proj)   # (B, TC, H)
    energies = jnp.einsum('bqh,bkh->bqk', v_b, energy,
                          preferred_element_type=jnp.float32,
                          precision=_HIGHEST)[:, 0, :]     # (B, TC), lane-dense, MXU v-reduce
    return _softmax_over_batch(energies)


def _concat_kernel(hid_proj_ref, enc_ref, w_enc_t_ref, v_ref, out_ref):
    B, TS, H = enc_ref.shape
    hid_proj = hid_proj_ref[...]                           # (B, 1, H)
    w_enc_t = w_enc_t_ref[...]                             # (H, H)
    v_b = v_ref[...]                                       # (B, 1, H)
    if TS <= 256:
        out_ref[...] = _concat_scores(enc_ref[...], hid_proj, w_enc_t, v_b)
    else:
        # TS is a multiple of 128 by construction (see _pick_s_tile). Chunk over 128-column
        # slabs so the tanh / projection intermediates stay at (B, 128, H), not (B, TS, H).
        # Softmax is over B per column, so columns are independent and can be written per slab.
        @pl.loop(0, TS // 128)
        def _(c):
            start = pl.multiple_of(c * 128, 128)
            enc_c = enc_ref[:, pl.ds(start, 128), :]
            out_ref[:, pl.ds(start, 128)] = _concat_scores(enc_c, hid_proj, w_enc_t, v_b)


# --------------------------------------------------------------------------
# Tiling / VMEM budgeting
# --------------------------------------------------------------------------
def _vmem_budgets():
    cap = 64 * 1024 * 1024                  # conservative default (v7x per-core VMEM)
    try:
        cap = int(pltpu.get_tpu_info().vmem_capacity_bytes)
    except Exception:
        pass
    # scoped limit: most of physical on v5e/v6e (128 MiB), conservative on v7x (64 MiB)
    limit = max(32 * 1024 * 1024, min(cap * 3 // 4, 100 * 1024 * 1024))
    # data budget used to size the double-buffered enc tile + resident operands
    data = min(cap * 2 // 5, 80 * 1024 * 1024)
    return int(limit), int(data)


def _pick_s_tile(S, B, H, data_budget, fixed_bytes):
    if S <= 256:
        return S                             # single full-S tile (small problem)
    per_ts = (2 * B * H + 8 * B) * 4         # double-buffered enc column + output/score temps
    avail = max(data_budget - fixed_bytes, 128 * per_ts)
    max_ts = max(128, (avail // per_ts) // 128 * 128)
    ts_half = (-(-S // 2) + 127) // 128 * 128   # >= 2 grid steps -> both v7x TCs get work
    return int(max(128, min(max_ts, ts_half, 4096)))


# --------------------------------------------------------------------------
# Wrapper
# --------------------------------------------------------------------------
def attention_forward(hidden, encoder_outputs, method='dot', params=None):
    """Pallas implementation of Attention.forward.

    hidden:          (B, H) float32
    encoder_outputs: (B, S, H) float32
    returns:         (S, 1, B) float32  (same as the PyTorch module)
    """
    if method not in ('dot', 'general', 'concat'):
        raise ValueError(method, 'is not an appropriate attention mechanism.')
    B, S, H = encoder_outputs.shape
    assert hidden.shape == (B, H), "expect 2-D hidden of shape (B, H)"
    # TODO(synk): hidden_transform_cache branch (hidden_dim != encoder dim) not reproduced.

    vmem_limit, data_budget = _vmem_budgets()
    chunk = 128 if S > 256 else S
    if method == 'concat':
        # resident: double-buffered w_enc_t, hid_proj, v_b + per-slab proj/tanh intermediates
        fixed = (2 * H * H + 6 * B * H + 3 * B * chunk * H) * 4
    else:
        fixed = (6 * B * H) * 4
    TS = _pick_s_tile(S, B, H, data_budget, fixed)
    grid = (pl.cdiv(S, TS),)

    enc_spec = pl.BlockSpec((B, TS, H), lambda s: (0, s, 0))
    out_spec = pl.BlockSpec((B, TS), lambda s: (0, s))
    out_shape = jax.ShapeDtypeStruct((B, S), jnp.float32)
    cparams = pltpu.CompilerParams(
        dimension_semantics=("parallel",),     # each S-tile's softmax over B is independent
        vmem_limit_bytes=vmem_limit,
    )

    if method in ('dot', 'general'):
        if method == 'dot':
            q = hidden
            hb = jnp.zeros((B, 1), jnp.float32)
        else:
            w, b = params
            # Hoisted, grid-invariant: hw = hidden @ W, hb = hidden @ bias (computed once).
            q = jnp.dot(hidden, w, precision=_HIGHEST)                 # (B, H)
            hb = jnp.dot(hidden, b, precision=_HIGHEST).reshape(B, 1)  # (B, 1)
        out_bs = pl.pallas_call(
            _score_kernel,
            out_shape=out_shape,
            grid=grid,
            in_specs=[pl.BlockSpec((B, 1, H), lambda s: (0, 0, 0)),
                      pl.BlockSpec((B, 1), lambda s: (0, 0)),
                      enc_spec],
            out_specs=out_spec,
            compiler_params=cparams,
        )(q.reshape(B, 1, H), hb, encoder_outputs)
    else:  # concat
        w, b, v = params
        w_hid = w[:, :H]                                   # (H_out, H_in) hidden half
        w_enc_t = jnp.transpose(w[:, H:])                  # (H_in, H_out) pre-transposed enc half
        # Hoisted, grid-invariant: hidden half of the Linear + bias, computed once.
        hid_proj = (jnp.dot(hidden, w_hid.T, precision=_HIGHEST) + b).reshape(B, 1, H)
        v_b = jnp.broadcast_to(v.reshape(1, 1, H), (B, 1, H))
        out_bs = pl.pallas_call(
            _concat_kernel,
            out_shape=out_shape,
            grid=grid,
            in_specs=[pl.BlockSpec((B, 1, H), lambda s: (0, 0, 0)),
                      enc_spec,
                      pl.BlockSpec((H, H), lambda s: (0, 0)),
                      pl.BlockSpec((B, 1, H), lambda s: (0, 0, 0))],
            out_specs=out_spec,
            compiler_params=cparams,
        )(hid_proj, encoder_outputs, w_enc_t, v_b)

    # (B, S) -> (S, B) -> (S, 1, B): matches the module's .t() + softmax(dim=1) + unsqueeze(1).
    return out_bs.T[:, None, :]


# --------------------------------------------------------------------------
# Pure-JAX reference (mirrors the PyTorch code exactly) for verification
# --------------------------------------------------------------------------
def attention_ref(hidden, encoder_outputs, method='dot', params=None):
    B, S, H = encoder_outputs.shape
    hid = jnp.broadcast_to(hidden[:, None, :], (B, S, H))
    if method == 'general':
        w, b = params
        energy = jnp.einsum('bsh,oh->bso', encoder_outputs, w, precision=_HIGHEST) + b
        energies = jnp.sum(hid * energy, axis=2)
    elif method == 'concat':
        w, b, v = params
        cat = jnp.concatenate([hid, encoder_outputs], axis=2)
        energy = jnp.tanh(jnp.einsum('bsk,ok->bso', cat, w, precision=_HIGHEST) + b)
        energies = jnp.sum(v * energy, axis=2)
    else:
        energies = jnp.sum(hid * encoder_outputs, axis=2)
    return jax.nn.softmax(energies.T, axis=1)[:, None, :]


# --------------------------------------------------------------------------
# Main
# --------------------------------------------------------------------------
if __name__ == "__main__":
    B, S, H = 2, 8, 32
    key = jax.random.PRNGKey(0)
    k_hid, k_enc, k_w1, k_b1, k_w2, k_b2, k_v = jax.random.split(key, 7)

    hidden = jax.random.normal(k_hid, (B, H), dtype=jnp.float32)
    encoder_outputs = jax.random.normal(k_enc, (B, S, H), dtype=jnp.float32)

    # Deterministic parameter init (torch nn.Linear-style uniform bounds).
    bound_g = 1.0 / (H ** 0.5)
    w_general = jax.random.uniform(k_w1, (H, H), jnp.float32, -bound_g, bound_g)
    b_general = jax.random.uniform(k_b1, (H,), jnp.float32, -bound_g, bound_g)
    bound_c = 1.0 / ((2 * H) ** 0.5)
    w_concat = jax.random.uniform(k_w2, (H, 2 * H), jnp.float32, -bound_c, bound_c)
    b_concat = jax.random.uniform(k_b2, (H,), jnp.float32, -bound_c, bound_c)
    v_concat = jax.random.uniform(k_v, (H,), jnp.float32, -bound_g, bound_g)

    configs = [
        ('dot', None),
        ('general', (w_general, b_general)),
        ('concat', (w_concat, b_concat, v_concat)),
    ]

    for method, params in configs:
        out = attention_forward(hidden, encoder_outputs, method=method, params=params)
        out = jax.block_until_ready(out)
        ref = attention_ref(hidden, encoder_outputs, method=method, params=params)
        assert out.shape == (S, 1, B), (method, out.shape)
        # tolerance allows for the approximate EUP reciprocal in the softmax denominator
        assert jnp.allclose(out, ref, atol=2e-3, rtol=2e-3), method

    print("KERNEL_OK")
</pallas_src>

<mosaic_0001>
module attributes {stable_mosaic.version = 11 : i64} {
  func.func @_score_kernel(%arg0: i32, %arg1: memref<2x1x32xf32, #tpu.memory_space<vmem>>, %arg2: memref<2x1xf32, #tpu.memory_space<vmem>>, %arg3: memref<2x8x32xf32, #tpu.memory_space<vmem>>, %arg4: memref<2x8xf32, #tpu.memory_space<vmem>>) attributes {dimension_semantics = [#tpu.dimension_semantics<parallel>], iteration_bounds = array<i64: 1>, scalar_prefetch = 0 : i64, scratch_operands = 0 : i64, tpu.core_type = #tpu.core_type<tc>, window_params = [{pipeline_mode = #tpu.pipeline_mode<synchronous>, transform_indices = @transform_0, window_bounds = array<i64: 2, 1, 32>}, {pipeline_mode = #tpu.pipeline_mode<synchronous>, transform_indices = @transform_1, window_bounds = array<i64: 2, 1>}, {transform_indices = @transform_2, window_bounds = array<i64: 2, 8, 32>}, {transform_indices = @transform_3, window_bounds = array<i64: 2, 8>}]} {
    %c0 = arith.constant 0 : index
    %c0_0 = arith.constant 0 : index
    %c0_1 = arith.constant 0 : index
    %0 = vector.load %arg1[%c0, %c0_0, %c0_1] : memref<2x1x32xf32, #tpu.memory_space<vmem>>, vector<2x1x32xf32>
    %c0_2 = arith.constant 0 : index
    %c0_3 = arith.constant 0 : index
    %c0_4 = arith.constant 0 : index
    %1 = vector.load %arg3[%c0_2, %c0_3, %c0_4] : memref<2x8x32xf32, #tpu.memory_space<vmem>>, vector<2x8x32xf32>
    "tpu.trace_start"() <{level = 10 : i32, message = "bqh,bkh->bqk"}> : () -> ()
    %cst = arith.constant dense<0.000000e+00> : vector<2x1x8xf32>
    %2 = tpu.matmul %0, %1, %cst {dimension_numbers = #tpu.dot_dimension_numbers<[2], [2], [1], [1], [0, 0, 0, 1, 1, 1], [0], [0]>, precision = #tpu.contract_precision<fp32>} : vector<2x1x32xf32>, vector<2x8x32xf32>, vector<2x1x8xf32> -> vector<2x1x8xf32>
    "tpu.trace_stop"() : () -> ()
    %3 = vector.shape_cast %2 : vector<2x1x8xf32> to vector<2x8xf32>
    %c0_5 = arith.constant 0 : index
    %c0_6 = arith.constant 0 : index
    %4 = vector.load %arg2[%c0_5, %c0_6] : memref<2x1xf32, #tpu.memory_space<vmem>>, vector<2x1xf32>
    %5 = vector.broadcast %4 : vector<2x1xf32> to vector<2x8xf32>
    %6 = arith.addf %3, %5 : vector<2x8xf32>
    %cst_7 = arith.constant dense<0xFF800000> : vector<8xf32>
    %7 = vector.multi_reduction <maximumf>, %6, %cst_7 [0] : vector<2x8xf32> to vector<8xf32>
    %8 = vector.shape_cast %7 : vector<8xf32> to vector<1x8xf32>
    %9 = vector.broadcast %8 : vector<1x8xf32> to vector<2x8xf32>
    %10 = arith.subf %6, %9 : vector<2x8xf32>
    %11 = math.exp %10 : vector<2x8xf32>
    %cst_8 = arith.constant dense<0.000000e+00> : vector<8xf32>
    %12 = vector.multi_reduction <add>, %11, %cst_8 [0] : vector<2x8xf32> to vector<8xf32>
    %13 = vector.shape_cast %12 : vector<8xf32> to vector<1x8xf32>
    %14 = tpu.reciprocal %13 {approx = true} : vector<1x8xf32> -> vector<1x8xf32>
    %15 = vector.broadcast %14 : vector<1x8xf32> to vector<2x8xf32>
    %16 = arith.mulf %11, %15 : vector<2x8xf32>
    %c0_9 = arith.constant 0 : index
    %c0_10 = arith.constant 0 : index
    %17 = vector.load %arg4[%c0_9, %c0_10] : memref<2x8xf32, #tpu.memory_space<vmem>>, vector<2x8xf32>
    tpu.vector_store %arg4[%c0_9, %c0_10], %16 {strides = array<i32>} : memref<2x8xf32, #tpu.memory_space<vmem>>, vector<2x8xf32>,
    return
  }
  func.func @transform_0(%arg0: i32) -> (i32, i32, i32) {
    %c0_i32 = arith.constant 0 : i32
    %c0_i32_0 = arith.constant 0 : i32
    %c0_i32_1 = arith.constant 0 : i32
    %c0_i32_2 = arith.constant 0 : i32
    return %c0_i32, %c0_i32_0, %c0_i32_1 : i32, i32, i32
  }
  func.func @transform_1(%arg0: i32) -> (i32, i32) {
    %c0_i32 = arith.constant 0 : i32
    %c0_i32_0 = arith.constant 0 : i32
    %c0_i32_1 = arith.constant 0 : i32
    return %c0_i32, %c0_i32_0 : i32, i32
  }
  func.func @transform_2(%arg0: i32) -> (i32, i32, i32) {
    %c0_i32 = arith.constant 0 : i32
    %c0_i32_0 = arith.constant 0 : i32
    %c0_i32_1 = arith.constant 0 : i32
    return %c0_i32, %arg0, %c0_i32_0 : i32, i32, i32
  }
  func.func @transform_3(%arg0: i32) -> (i32, i32) {
    %c0_i32 = arith.constant 0 : i32
    %c0_i32_0 = arith.constant 0 : i32
    return %c0_i32, %arg0 : i32, i32
  }
}

</mosaic_0001>

<llo_original>
// kernel: tpu_custom_call.1
$region0: #{tpu_custom_call.1}
  #allocation0 [shape = 'u32[]', space=smem, size = 0x4, offset = 0x4, fixed_abs, tag = 'smem constant byte address 0x4 - core index']
  #allocation1 [shape = 'u32[144,128]{1,0:T(1,128)}', space=vmem, size = 0x12000, scoped, tag = 'internal scratch']
  %s0 = inlined_call_operand.vmem [shape: f32[2,1,32], index: 0, kind: input, shape index: {}]
  %s1 = inlined_call_operand.vmem [shape: f32[2,1], index: 1, kind: input, shape index: {}]
  %s2 = inlined_call_operand.hbm [shape: f32[2,8,32], index: 2, kind: input, shape index: {}]
  %s3 = inlined_call_operand.hbm [shape: f32[2,8], index: 3, kind: output, shape index: {}]
  %s4 = sld [smem:[#allocation0]]
  $region26: #{tpu_custom_call.1} parent=0
    _
  %s6 = ssub.s32 1, %s4
  %s7 = scalar_select 0, %s6, %s4
  $region1: #{tpu_custom_call.1} parent=0
    #allocation2 [shape = 'u8[8192]{0}', space=vmem, size = 0x2000, scoped, tag = 'input window, operand 2, single buffered']
    #allocation3 [shape = 's32[1]{0}', space=sflag, size = 0x4, scoped, tag = 'scoped memory for tpu_custom_call.1']
    #allocation4 [shape = 's32[1]{0}', space=sflag, size = 0x4, scoped, tag = 'scoped memory for tpu_custom_call.1']
    #allocation5 [shape = 'u8[1024]{0}', space=vmem, size = 0x400, scoped, tag = 'output window, operand 0, single buffered']
    %8 = vsyncpa [#allocation3], 0
    %9 = vsyncpa [#allocation4], 0
    // Predicated region
    $region2: #{tpu_custom_call.1} parent=1 // pred_check
      _
    $region3: #{tpu_custom_call.1} parent=1 // pred_check_branch
      %11 = sbr.rel (0) target = $region5
    $region4: #{tpu_custom_call.1} parent=1 // pred_region
      _
    $region5: #{tpu_custom_call.1} parent=1 // pred_fallthru
      _
    // Predicated region
    $region6: #{tpu_custom_call.1} parent=1 // pred_check
      _
    $region7: #{tpu_custom_call.1} parent=1 // pred_check_branch
      %13 = sbr.rel (0) target = $region9
    $region8: #{tpu_custom_call.1} parent=1 // pred_region
      _
    $region9: #{tpu_custom_call.1} parent=1 // pred_fallthru
      _
    // Predicated region
    $region10: #{tpu_custom_call.1} parent=1 // pred_check
      _
    $region11: #{tpu_custom_call.1} parent=1 // pred_check_branch
      %15 = sbr.rel (0) target = $region13
    $region12: #{tpu_custom_call.1} parent=1 // pred_region
      %s17 = ssub.s32 256, 256
      %18 = vsyncadd [#allocation3], %s17
      %s19 = sshll.u32 [#allocation2], 4
      %s20 = int_to_ptr.vmem [resolvable:$true] %s19
      %25 = dma.hbm_to_vmem [thread:$0]  %s2, 256, %s20, [#allocation3], 128, 128, 8
    $region13: #{tpu_custom_call.1} parent=1 // pred_fallthru
      _
    // Predicated region
    $region14: #{tpu_custom_call.1} parent=1 // pred_check
      _
    $region15: #{tpu_custom_call.1} parent=1 // pred_check_branch
      %27 = sbr.rel (0) target = $region17
    $region16: #{tpu_custom_call.1} parent=1 // pred_region
      %28 = dma.done [#allocation3], 256
    $region17: #{tpu_custom_call.1} parent=1 // pred_fallthru
      _
    %v29 = vld [vmem:[%s0] sm:$0x1]
    %v30 = vld [vmem:[%s0 + $0x1] sm:$0x1]
    %v31 = vld [vmem:[#allocation2] sm:$0xff]
    %v32 = vld [vmem:[#allocation2 + $0x8] sm:$0xff]
    %vm33 = vcmask 261120
    %v35 = vsel %vm33, %v29, 0
    %v38 = vsel %vm33, %v31, 0
    %40 = vmatprep.subr.mxu0 0.0
    %v41 = vand.u32 %v38, 4294901760
    %42 = vmatpush1.xpose.msra.mxu0 %v41
    %43 = vmatprep.subr.mxu0 0.0
    %44 = vmatpush1.xpose.msra.mxu0 0.0
    %45 = vmatprep.subr.mxu0 0.0
    %46 = vmatpush1.xpose.msra.mxu0 0.0
    %47 = vmatprep.subr.mxu0 0.0
    %48 = vmatpush1.xpose.msra.mxu0 0.0
    %49 = vmatprep.subr.mxu0 0.0
    %50 = vmatpush1.xpose.msra.mxu0 0.0
    %51 = vmatprep.subr.mxu0 0.0
    %52 = vmatpush1.xpose.msra.mxu0 0.0
    %53 = vmatprep.subr.mxu0 0.0
    %54 = vmatpush1.xpose.msra.mxu0 0.0
    %55 = vmatprep.subr.mxu0 0.0
    %56 = vmatpush1.xpose.msra.mxu0 0.0
    %57 = vmatprep.subr.mxu0 0.0
    %58 = vmatpush1.xpose.msra.mxu0 0.0
    %59 = vmatprep.subr.mxu0 0.0
    %60 = vmatpush1.xpose.msra.mxu0 0.0
    %61 = vmatprep.subr.mxu0 0.0
    %62 = vmatpush1.xpose.msra.mxu0 0.0
    %63 = vmatprep.subr.mxu0 0.0
    %64 = vmatpush1.xpose.msra.mxu0 0.0
    %65 = vmatprep.subr.mxu0 0.0
    %66 = vmatpush1.xpose.msra.mxu0 0.0
    %67 = vmatprep.subr.mxu0 0.0
    %68 = vmatpush1.xpose.msra.mxu0 0.0
    %69 = vmatprep.subr.mxu0 0.0
    %70 = vmatpush1.xpose.msra.mxu0 0.0
    %71 = vmatprep.subr.mxu0 0.0
    %72 = vmatpush1.xpose.msra.mxu0 0.0
    %73 = vmatprep.subr.mxu0 0.0
    %74 = vmatpush1.xpose.msra.mxu0 0.0
    %75 = vmatprep.subr.mxu0 0.0
    %76 = vmatpush1.xpose.msra.mxu0 0.0
    %77 = vmatprep.subr.mxu0 0.0
    %78 = vmatpush1.xpose.msra.mxu0 0.0
    %79 = vmatprep.subr.mxu0 0.0
    %80 = vmatpush1.xpose.msra.mxu0 0.0
    %81 = vmatprep.subr.mxu0 0.0
    %82 = vmatpush1.xpose.msra.mxu0 0.0
    %83 = vmatprep.subr.mxu0 0.0
    %84 = vmatpush1.xpose.msra.mxu0 0.0
    %85 = vmatprep.subr.mxu0 0.0
    %86 = vmatpush1.xpose.msra.mxu0 0.0
    %87 = vmatprep.subr.mxu0 0.0
    %88 = vmatpush1.xpose.msra.mxu0 0.0
    %89 = vmatprep.subr.mxu0 0.0
    %90 = vmatpush1.xpose.msra.mxu0 0.0
    %91 = vmatprep.subr.mxu0 0.0
    %92 = vmatpush1.xpose.msra.mxu0 0.0
    %93 = vmatprep.subr.mxu0 0.0
    %94 = vmatpush1.xpose.msra.mxu0 0.0
    %95 = vmatprep.subr.mxu0 0.0
    %96 = vmatpush1.xpose.msra.mxu0 0.0
    %97 = vmatprep.subr.mxu0 0.0
    %98 = vmatpush1.xpose.msra.mxu0 0.0
    %99 = vmatprep.subr.mxu0 0.0
    %100 = vmatpush1.xpose.msra.mxu0 0.0
    %101 = vmatprep.subr.mxu0 0.0
    %102 = vmatpush1.xpose.msra.mxu0 0.0
    %103 = vmatprep.subr.mxu0 0.0
    %104 = vmatpush1.xpose.msra.mxu0 0.0
    %105 = vmatprep.mubr.f32.mxu0 0.0
    %v106 = vand.u32 %v35, 4294901760
    %v107 = vsub.f32 %v35, %v106
    %v108 = vand.u32 %v107, 4294901760
    %v109 = vsub.f32 %v107, %v108
    %v110 = vand.u32 %v109, 4294901760
    %111 = vmatmul.mubr.f32.gmra.mrb[0].mxu0 %v110
    %v112 = vpop.f32.mrb[0].mxu0
    %v113 = vadd.f32 0.0, %v112
    %v114 = vpop.f32.mrb[0].mxu0
    %115 = vdwg.mxu0
    %116 = vmatprep.subr.mxu0 0.0
    %v117 = vand.u32 %v38, 4294901760
    %v118 = vsub.f32 %v38, %v117
    %v119 = vand.u32 %v118, 4294901760
    %v120 = vsub.f32 %v118, %v119
    %v121 = vand.u32 %v120, 4294901760
    %122 = vmatpush1.xpose.msra.mxu0 %v121
    %123 = vmatprep.subr.mxu0 0.0
    %124 = vmatpush1.xpose.msra.mxu0 0.0
    %125 = vmatprep.subr.mxu0 0.0
    %126 = vmatpush1.xpose.msra.mxu0 0.0
    %127 = vmatprep.subr.mxu0 0.0
    %128 = vmatpush1.xpose.msra.mxu0 0.0
    %129 = vmatprep.subr.mxu0 0.0
    %130 = vmatpush1.xpose.msra.mxu0 0.0
    %131 = vmatprep.subr.mxu0 0.0
    %132 = vmatpush1.xpose.msra.mxu0 0.0
    %133 = vmatprep.subr.mxu0 0.0
    %134 = vmatpush1.xpose.msra.mxu0 0.0
    %135 = vmatprep.subr.mxu0 0.0
    %136 = vmatpush1.xpose.msra.mxu0 0.0
    %137 = vmatprep.subr.mxu0 0.0
    %138 = vmatpush1.xpose.msra.mxu0 0.0
    %139 = vmatprep.subr.mxu0 0.0
    %140 = vmatpush1.xpose.msra.mxu0 0.0
    %141 = vmatprep.subr.mxu0 0.0
    %142 = vmatpush1.xpose.msra.mxu0 0.0
    %143 = vmatprep.subr.mxu0 0.0
    %144 = vmatpush1.xpose.msra.mxu0 0.0
    %145 = vmatprep.subr.mxu0 0.0
    %146 = vmatpush1.xpose.msra.mxu0 0.0
    %147 = vmatprep.subr.mxu0 0.0
    %148 = vmatpush1.xpose.msra.mxu0 0.0
    %149 = vmatprep.subr.mxu0 0.0
    %150 = vmatpush1.xpose.msra.mxu0 0.0
    %151 = vmatprep.subr.mxu0 0.0
    %152 = vmatpush1.xpose.msra.mxu0 0.0
    %153 = vmatprep.subr.mxu0 0.0
    %154 = vmatpush1.xpose.msra.mxu0 0.0
    %155 = vmatprep.subr.mxu0 0.0
    %156 = vmatpush1.xpose.msra.mxu0 0.0
    %157 = vmatprep.subr.mxu0 0.0
    %158 = vmatpush1.xpose.msra.mxu0 0.0
    %159 = vmatprep.subr.mxu0 0.0
    %160 = vmatpush1.xpose.msra.mxu0 0.0
    %161 = vmatprep.subr.mxu0 0.0
    %162 = vmatpush1.xpose.msra.mxu0 0.0
    %163 = vmatprep.subr.mxu0 0.0
    %164 = vmatpush1.xpose.msra.mxu0 0.0
    %165 = vmatprep.subr.mxu0 0.0
    %166 = vmatpush1.xpose.msra.mxu0 0.0
    %167 = vmatprep.subr.mxu0 0.0
    %168 = vmatpush1.xpose.msra.mxu0 0.0
    %169 = vmatprep.subr.mxu0 0.0
    %170 = vmatpush1.xpose.msra.mxu0 0.0
    %171 = vmatprep.subr.mxu0 0.0
    %172 = vmatpush1.xpose.msra.mxu0 0.0
    %173 = vmatprep.subr.mxu0 0.0
    %174 = vmatpush1.xpose.msra.mxu0 0.0
    %175 = vmatprep.subr.mxu0 0.0
    %176 = vmatpush1.xpose.msra.mxu0 0.0
    %177 = vmatprep.subr.mxu0 0.0
    %178 = vmatpush1.xpose.msra.mxu0 0.0
    %179 = vmatprep.subr.mxu0 0.0
    %180 = vmatpush1.xpose.msra.mxu0 0.0
    %181 = vmatprep.subr.mxu0 0.0
    %182 = vmatpush1.xpose.msra.mxu0 0.0
    %183 = vmatprep.subr.mxu0 0.0
    %184 = vmatpush1.xpose.msra.mxu0 0.0
    %185 = vmatprep.mubr.f32.mxu0 0.0
    %v186 = vand.u32 %v35, 4294901760
    %187 = vmatmul.mubr.f32.gmra.mrb[0].mxu0 %v186
    %v188 = vpop.f32.mrb[0].mxu0
    %v189 = vadd.f32 %v113, %v188
    %v190 = vpop.f32.mrb[0].mxu0
    %191 = vdwg.mxu0
    %192 = vmatprep.subr.mxu0 0.0
    %v193 = vand.u32 %v38, 4294901760
    %v194 = vsub.f32 %v38, %v193
    %195 = vmatpush1.xpose.msra.mxu0 %v194
    %196 = vmatprep.subr.mxu0 0.0
    %197 = vmatpush1.xpose.msra.mxu0 0.0
    %198 = vmatprep.subr.mxu0 0.0
    %199 = vmatpush1.xpose.msra.mxu0 0.0
    %200 = vmatprep.subr.mxu0 0.0
    %201 = vmatpush1.xpose.msra.mxu0 0.0
    %202 = vmatprep.subr.mxu0 0.0
    %203 = vmatpush1.xpose.msra.mxu0 0.0
    %204 = vmatprep.subr.mxu0 0.0
    %205 = vmatpush1.xpose.msra.mxu0 0.0
    %206 = vmatprep.subr.mxu0 0.0
    %207 = vmatpush1.xpose.msra.mxu0 0.0
    %208 = vmatprep.subr.mxu0 0.0
    %209 = vmatpush1.xpose.msra.mxu0 0.0
    %210 = vmatprep.subr.mxu0 0.0
    %211 = vmatpush1.xpose.msra.mxu0 0.0
    %212 = vmatprep.subr.mxu0 0.0
    %213 = vmatpush1.xpose.msra.mxu0 0.0
    %214 = vmatprep.subr.mxu0 0.0
    %215 = vmatpush1.xpose.msra.mxu0 0.0
    %216 = vmatprep.subr.mxu0 0.0
    %217 = vmatpush1.xpose.msra.mxu0 0.0
    %218 = vmatprep.subr.mxu0 0.0
    %219 = vmatpush1.xpose.msra.mxu0 0.0
    %220 = vmatprep.subr.mxu0 0.0
    %221 = vmatpush1.xpose.msra.mxu0 0.0
    %222 = vmatprep.subr.mxu0 0.0
    %223 = vmatpush1.xpose.msra.mxu0 0.0
    %224 = vmatprep.subr.mxu0 0.0
    %225 = vmatpush1.xpose.msra.mxu0 0.0
    %226 = vmatprep.subr.mxu0 0.0
    %227 = vmatpush1.xpose.msra.mxu0 0.0
    %228 = vmatprep.subr.mxu0 0.0
    %229 = vmatpush1.xpose.msra.mxu0 0.0
    %230 = vmatprep.subr.mxu0 0.0
    %231 = vmatpush1.xpose.msra.mxu0 0.0
    %232 = vmatprep.subr.mxu0 0.0
    %233 = vmatpush1.xpose.msra.mxu0 0.0
    %234 = vmatprep.subr.mxu0 0.0
    %235 = vmatpush1.xpose.msra.mxu0 0.0
    %236 = vmatprep.subr.mxu0 0.0
    %237 = vmatpush1.xpose.msra.mxu0 0.0
    %238 = vmatprep.subr.mxu0 0.0
    %239 = vmatpush1.xpose.msra.mxu0 0.0
    %240 = vmatprep.subr.mxu0 0.0
    %241 = vmatpush1.xpose.msra.mxu0 0.0
    %242 = vmatprep.subr.mxu0 0.0
    %243 = vmatpush1.xpose.msra.mxu0 0.0
    %244 = vmatprep.subr.mxu0 0.0
    %245 = vmatpush1.xpose.msra.mxu0 0.0
    %246 = vmatprep.subr.mxu0 0.0
    %247 = vmatpush1.xpose.msra.mxu0 0.0
    %248 = vmatprep.subr.mxu0 0.0
    %249 = vmatpush1.xpose.msra.mxu0 0.0
    %250 = vmatprep.subr.mxu0 0.0
    %251 = vmatpush1.xpose.msra.mxu0 0.0
    %252 = vmatprep.subr.mxu0 0.0
    %253 = vmatpush1.xpose.msra.mxu0 0.0
    %254 = vmatprep.subr.mxu0 0.0
    %255 = vmatpush1.xpose.msra.mxu0 0.0
    %256 = vmatprep.subr.mxu0 0.0
    %257 = vmatpush1.xpose.msra.mxu0 0.0
    %258 = vmatprep.mubr.f32.mxu0 0.0
    %v259 = vand.u32 %v35, 4294901760
    %v260 = vsub.f32 %v35, %v259
    %261 = vmatmul.mubr.f32.gmra.mrb[0].mxu0 %v260
    %v262 = vpop.f32.mrb[0].mxu0
    %v263 = vadd.f32 %v189, %v262
    %v264 = vpop.f32.mrb[0].mxu0
    %265 = vdwg.mxu0
    %266 = vmatprep.subr.mxu0 0.0
    %v267 = vand.u32 %v38, 4294901760
    %268 = vmatpush1.xpose.msra.mxu0 %v267
    %269 = vmatprep.subr.mxu0 0.0
    %270 = vmatpush1.xpose.msra.mxu0 0.0
    %271 = vmatprep.subr.mxu0 0.0
    %272 = vmatpush1.xpose.msra.mxu0 0.0
    %273 = vmatprep.subr.mxu0 0.0
    %274 = vmatpush1.xpose.msra.mxu0 0.0
    %275 = vmatprep.subr.mxu0 0.0
    %276 = vmatpush1.xpose.msra.mxu0 0.0
    %277 = vmatprep.subr.mxu0 0.0
    %278 = vmatpush1.xpose.msra.mxu0 0.0
    %279 = vmatprep.subr.mxu0 0.0
    %280 = vmatpush1.xpose.msra.mxu0 0.0
    %281 = vmatprep.subr.mxu0 0.0
    %282 = vmatpush1.xpose.msra.mxu0 0.0
    %283 = vmatprep.subr.mxu0 0.0
    %284 = vmatpush1.xpose.msra.mxu0 0.0
    %285 = vmatprep.subr.mxu0 0.0
    %286 = vmatpush1.xpose.msra.mxu0 0.0
    %287 = vmatprep.subr.mxu0 0.0
    %288 = vmatpush1.xpose.msra.mxu0 0.0
    %289 = vmatprep.subr.mxu0 0.0
    %290 = vmatpush1.xpose.msra.mxu0 0.0
    %291 = vmatprep.subr.mxu0 0.0
    %292 = vmatpush1.xpose.msra.mxu0 0.0
    %293 = vmatprep.subr.mxu0 0.0
    %294 = vmatpush1.xpose.msra.mxu0 0.0
    %295 = vmatprep.subr.mxu0 0.0
    %296 = vmatpush1.xpose.msra.mxu0 0.0
    %297 = vmatprep.subr.mxu0 0.0
    %298 = vmatpush1.xpose.msra.mxu0 0.0
    %299 = vmatprep.subr.mxu0 0.0
    %300 = vmatpush1.xpose.msra.mxu0 0.0
    %301 = vmatprep.subr.mxu0 0.0
    %302 = vmatpush1.xpose.msra.mxu0 0.0
    %303 = vmatprep.subr.mxu0 0.0
    %304 = vmatpush1.xpose.msra.mxu0 0.0
    %305 = vmatprep.subr.mxu0 0.0
    %306 = vmatpush1.xpose.msra.mxu0 0.0
    %307 = vmatprep.subr.mxu0 0.0
    %308 = vmatpush1.xpose.msra.mxu0 0.0
    %309 = vmatprep.subr.mxu0 0.0
    %310 = vmatpush1.xpose.msra.mxu0 0.0
    %311 = vmatprep.subr.mxu0 0.0
    %312 = vmatpush1.xpose.msra.mxu0 0.0
    %313 = vmatprep.subr.mxu0 0.0
    %314 = vmatpush1.xpose.msra.mxu0 0.0
    %315 = vmatprep.subr.mxu0 0.0
    %316 = vmatpush1.xpose.msra.mxu0 0.0
    %317 = vmatprep.subr.mxu0 0.0
    %318 = vmatpush1.xpose.msra.mxu0 0.0
    %319 = vmatprep.subr.mxu0 0.0
    %320 = vmatpush1.xpose.msra.mxu0 0.0
    %321 = vmatprep.subr.mxu0 0.0
    %322 = vmatpush1.xpose.msra.mxu0 0.0
    %323 = vmatprep.subr.mxu0 0.0
    %324 = vmatpush1.xpose.msra.mxu0 0.0
    %325 = vmatprep.subr.mxu0 0.0
    %326 = vmatpush1.xpose.msra.mxu0 0.0
    %327 = vmatprep.subr.mxu0 0.0
    %328 = vmatpush1.xpose.msra.mxu0 0.0
    %329 = vmatprep.subr.mxu0 0.0
    %330 = vmatpush1.xpose.msra.mxu0 0.0
    %331 = vmatprep.mubr.f32.mxu0 0.0
    %v332 = vand.u32 %v35, 4294901760
    %v333 = vsub.f32 %v35, %v332
    %v334 = vand.u32 %v333, 4294901760
    %335 = vmatmul.mubr.f32.gmra.mrb[0].mxu0 %v334
    %v336 = vpop.f32.mrb[0].mxu0
    %v337 = vadd.f32 %v263, %v336
    %v338 = vpop.f32.mrb[0].mxu0
    %339 = vdwg.mxu0
    %340 = vmatprep.subr.mxu0 0.0
    %v341 = vand.u32 %v38, 4294901760
    %v342 = vsub.f32 %v38, %v341
    %v343 = vand.u32 %v342, 4294901760
    %344 = vmatpush1.xpose.msra.mxu0 %v343
    %345 = vmatprep.subr.mxu0 0.0
    %346 = vmatpush1.xpose.msra.mxu0 0.0
    %347 = vmatprep.subr.mxu0 0.0
    %348 = vmatpush1.xpose.msra.mxu0 0.0
    %349 = vmatprep.subr.mxu0 0.0
    %350 = vmatpush1.xpose.msra.mxu0 0.0
    %351 = vmatprep.subr.mxu0 0.0
    %352 = vmatpush1.xpose.msra.mxu0 0.0
    %353 = vmatprep.subr.mxu0 0.0
    %354 = vmatpush1.xpose.msra.mxu0 0.0
    %355 = vmatprep.subr.mxu0 0.0
    %356 = vmatpush1.xpose.msra.mxu0 0.0
    %357 = vmatprep.subr.mxu0 0.0
    %358 = vmatpush1.xpose.msra.mxu0 0.0
    %359 = vmatprep.subr.mxu0 0.0
    %360 = vmatpush1.xpose.msra.mxu0 0.0
    %361 = vmatprep.subr.mxu0 0.0
    %362 = vmatpush1.xpose.msra.mxu0 0.0
    %363 = vmatprep.subr.mxu0 0.0
    %364 = vmatpush1.xpose.msra.mxu0 0.0
    %365 = vmatprep.subr.mxu0 0.0
    %366 = vmatpush1.xpose.msra.mxu0 0.0
    %367 = vmatprep.subr.mxu0 0.0
    %368 = vmatpush1.xpose.msra.mxu0 0.0
    %369 = vmatprep.subr.mxu0 0.0
    %370 = vmatpush1.xpose.msra.mxu0 0.0
    %371 = vmatprep.subr.mxu0 0.0
    %372 = vmatpush1.xpose.msra.mxu0 0.0
    %373 = vmatprep.subr.mxu0 0.0
    %374 = vmatpush1.xpose.msra.mxu0 0.0
    %375 = vmatprep.subr.mxu0 0.0
    %376 = vmatpush1.xpose.msra.mxu0 0.0
    %377 = vmatprep.subr.mxu0 0.0
    %378 = vmatpush1.xpose.msra.mxu0 0.0
    %379 = vmatprep.subr.mxu0 0.0
    %380 = vmatpush1.xpose.msra.mxu0 0.0
    %381 = vmatprep.subr.mxu0 0.0
    %382 = vmatpush1.xpose.msra.mxu0 0.0
    %383 = vmatprep.subr.mxu0 0.0
    %384 = vmatpush1.xpose.msra.mxu0 0.0
    %385 = vmatprep.subr.mxu0 0.0
    %386 = vmatpush1.xpose.msra.mxu0 0.0
    %387 = vmatprep.subr.mxu0 0.0
    %388 = vmatpush1.xpose.msra.mxu0 0.0
    %389 = vmatprep.subr.mxu0 0.0
    %390 = vmatpush1.xpose.msra.mxu0 0.0
    %391 = vmatprep.subr.mxu0 0.0
    %392 = vmatpush1.xpose.msra.mxu0 0.0
    %393 = vmatprep.subr.mxu0 0.0
    %394 = vmatpush1.xpose.msra.mxu0 0.0
    %395 = vmatprep.subr.mxu0 0.0
    %396 = vmatpush1.xpose.msra.mxu0 0.0
    %397 = vmatprep.subr.mxu0 0.0
    %398 = vmatpush1.xpose.msra.mxu0 0.0
    %399 = vmatprep.subr.mxu0 0.0
    %400 = vmatpush1.xpose.msra.mxu0 0.0
    %401 = vmatprep.subr.mxu0 0.0
    %402 = vmatpush1.xpose.msra.mxu0 0.0
    %403 = vmatprep.subr.mxu0 0.0
    %404 = vmatpush1.xpose.msra.mxu0 0.0
    %405 = vmatprep.subr.mxu0 0.0
    %406 = vmatpush1.xpose.msra.mxu0 0.0
    %407 = vmatprep.mubr.f32.mxu0 0.0
    %v408 = vand.u32 %v35, 4294901760
    %409 = vmatmul.mubr.f32.gmra.mrb[0].mxu0 %v408
    %v410 = vpop.f32.mrb[0].mxu0
    %v411 = vadd.f32 %v337, %v410
    %v412 = vpop.f32.mrb[0].mxu0
    %413 = vdwg.mxu0
    %414 = vmatprep.subr.mxu0 0.0
    %v415 = vand.u32 %v38, 4294901760
    %416 = vmatpush1.xpose.msra.mxu0 %v415
    %417 = vmatprep.subr.mxu0 0.0
    %418 = vmatpush1.xpose.msra.mxu0 0.0
    %419 = vmatprep.subr.mxu0 0.0
    %420 = vmatpush1.xpose.msra.mxu0 0.0
    %421 = vmatprep.subr.mxu0 0.0
    %422 = vmatpush1.xpose.msra.mxu0 0.0
    %423 = vmatprep.subr.mxu0 0.0
    %424 = vmatpush1.xpose.msra.mxu0 0.0
    %425 = vmatprep.subr.mxu0 0.0
    %426 = vmatpush1.xpose.msra.mxu0 0.0
    %427 = vmatprep.subr.mxu0 0.0
    %428 = vmatpush1.xpose.msra.mxu0 0.0
    %429 = vmatprep.subr.mxu0 0.0
    %430 = vmatpush1.xpose.msra.mxu0 0.0
    %431 = vmatprep.subr.mxu0 0.0
    %432 = vmatpush1.xpose.msra.mxu0 0.0
    %433 = vmatprep.subr.mxu0 0.0
    %434 = vmatpush1.xpose.msra.mxu0 0.0
    %435 = vmatprep.subr.mxu0 0.0
    %436 = vmatpush1.xpose.msra.mxu0 0.0
    %437 = vmatprep.subr.mxu0 0.0
    %438 = vmatpush1.xpose.msra.mxu0 0.0
    %439 = vmatprep.subr.mxu0 0.0
    %440 = vmatpush1.xpose.msra.mxu0 0.0
    %441 = vmatprep.subr.mxu0 0.0
    %442 = vmatpush1.xpose.msra.mxu0 0.0
    %443 = vmatprep.subr.mxu0 0.0
    %444 = vmatpush1.xpose.msra.mxu0 0.0
    %445 = vmatprep.subr.mxu0 0.0
    %446 = vmatpush1.xpose.msra.mxu0 0.0
    %447 = vmatprep.subr.mxu0 0.0
    %448 = vmatpush1.xpose.msra.mxu0 0.0
    %449 = vmatprep.subr.mxu0 0.0
    %450 = vmatpush1.xpose.msra.mxu0 0.0
    %451 = vmatprep.subr.mxu0 0.0
    %452 = vmatpush1.xpose.msra.mxu0 0.0
    %453 = vmatprep.subr.mxu0 0.0
    %454 = vmatpush1.xpose.msra.mxu0 0.0
    %455 = vmatprep.subr.mxu0 0.0
    %456 = vmatpush1.xpose.msra.mxu0 0.0
    %457 = vmatprep.subr.mxu0 0.0
    %458 = vmatpush1.xpose.msra.mxu0 0.0
    %459 = vmatprep.subr.mxu0 0.0
    %460 = vmatpush1.xpose.msra.mxu0 0.0
    %461 = vmatprep.subr.mxu0 0.0
    %462 = vmatpush1.xpose.msra.mxu0 0.0
    %463 = vmatprep.subr.mxu0 0.0
    %464 = vmatpush1.xpose.msra.mxu0 0.0
    %465 = vmatprep.subr.mxu0 0.0
    %466 = vmatpush1.xpose.msra.mxu0 0.0
    %467 = vmatprep.subr.mxu0 0.0
    %468 = vmatpush1.xpose.msra.mxu0 0.0
    %469 = vmatprep.subr.mxu0 0.0
    %470 = vmatpush1.xpose.msra.mxu0 0.0
    %471 = vmatprep.subr.mxu0 0.0
    %472 = vmatpush1.xpose.msra.mxu0 0.0
    %473 = vmatprep.subr.mxu0 0.0
    %474 = vmatpush1.xpose.msra.mxu0 0.0
    %475 = vmatprep.subr.mxu0 0.0
    %476 = vmatpush1.xpose.msra.mxu0 0.0
    %477 = vmatprep.subr.mxu0 0.0
    %478 = vmatpush1.xpose.msra.mxu0 0.0
    %479 = vmatprep.mubr.f32.mxu0 0.0
    %v480 = vand.u32 %v35, 4294901760
    %481 = vmatmul.mubr.f32.gmra.mrb[0].mxu0 %v480
    %v482 = vpop.f32.mrb[0].mxu0
    %v483 = vadd.f32 %v411, %v482
    %v484 = vpop.f32.mrb[0].mxu0
    %485 = vdwg.mxu0
    %v487 = vsel %vm33, %v30, 0
    %v490 = vsel %vm33, %v32, 0
    %492 = vmatprep.subr.mxu0 0.0
    %v493 = vand.u32 %v490, 4294901760
    %494 = vmatpush1.xpose.msra.mxu0 %v493
    %495 = vmatprep.subr.mxu0 0.0
    %496 = vmatpush1.xpose.msra.mxu0 0.0
    %497 = vmatprep.subr.mxu0 0.0
    %498 = vmatpush1.xpose.msra.mxu0 0.0
    %499 = vmatprep.subr.mxu0 0.0
    %500 = vmatpush1.xpose.msra.mxu0 0.0
    %501 = vmatprep.subr.mxu0 0.0
    %502 = vmatpush1.xpose.msra.mxu0 0.0
    %503 = vmatprep.subr.mxu0 0.0
    %504 = vmatpush1.xpose.msra.mxu0 0.0
    %505 = vmatprep.subr.mxu0 0.0
    %506 = vmatpush1.xpose.msra.mxu0 0.0
    %507 = vmatprep.subr.mxu0 0.0
    %508 = vmatpush1.xpose.msra.mxu0 0.0
    %509 = vmatprep.subr.mxu0 0.0
    %510 = vmatpush1.xpose.msra.mxu0 0.0
    %511 = vmatprep.subr.mxu0 0.0
    %512 = vmatpush1.xpose.msra.mxu0 0.0
    %513 = vmatprep.subr.mxu0 0.0
    %514 = vmatpush1.xpose.msra.mxu0 0.0
    %515 = vmatprep.subr.mxu0 0.0
    %516 = vmatpush1.xpose.msra.mxu0 0.0
    %517 = vmatprep.subr.mxu0 0.0
    %518 = vmatpush1.xpose.msra.mxu0 0.0
    %519 = vmatprep.subr.mxu0 0.0
    %520 = vmatpush1.xpose.msra.mxu0 0.0
    %521 = vmatprep.subr.mxu0 0.0
    %522 = vmatpush1.xpose.msra.mxu0 0.0
    %523 = vmatprep.subr.mxu0 0.0
    %524 = vmatpush1.xpose.msra.mxu0 0.0
    %525 = vmatprep.subr.mxu0 0.0
    %526 = vmatpush1.xpose.msra.mxu0 0.0
    %527 = vmatprep.subr.mxu0 0.0
    %528 = vmatpush1.xpose.msra.mxu0 0.0
    %529 = vmatprep.subr.mxu0 0.0
    %530 = vmatpush1.xpose.msra.mxu0 0.0
    %531 = vmatprep.subr.mxu0 0.0
    %532 = vmatpush1.xpose.msra.mxu0 0.0
    %533 = vmatprep.subr.mxu0 0.0
    %534 = vmatpush1.xpose.msra.mxu0 0.0
    %535 = vmatprep.subr.mxu0 0.0
    %536 = vmatpush1.xpose.msra.mxu0 0.0
    %537 = vmatprep.subr.mxu0 0.0
    %538 = vmatpush1.xpose.msra.mxu0 0.0
    %539 = vmatprep.subr.mxu0 0.0
    %540 = vmatpush1.xpose.msra.mxu0 0.0
    %541 = vmatprep.subr.mxu0 0.0
    %542 = vmatpush1.xpose.msra.mxu0 0.0
    %543 = vmatprep.subr.mxu0 0.0
    %544 = vmatpush1.xpose.msra.mxu0 0.0
    %545 = vmatprep.subr.mxu0 0.0
    %546 = vmatpush1.xpose.msra.mxu0 0.0
    %547 = vmatprep.subr.mxu0 0.0
    %548 = vmatpush1.xpose.msra.mxu0 0.0
    %549 = vmatprep.subr.mxu0 0.0
    %550 = vmatpush1.xpose.msra.mxu0 0.0
    %551 = vmatprep.subr.mxu0 0.0
    %552 = vmatpush1.xpose.msra.mxu0 0.0
    %553 = vmatprep.subr.mxu0 0.0
    %554 = vmatpush1.xpose.msra.mxu0 0.0
    %555 = vmatprep.subr.mxu0 0.0
    %556 = vmatpush1.xpose.msra.mxu0 0.0
    %557 = vmatprep.mubr.f32.mxu0 0.0
    %v558 = vand.u32 %v487, 4294901760
    %v559 = vsub.f32 %v487, %v558
    %v560 = vand.u32 %v559, 4294901760
    %v561 = vsub.f32 %v559, %v560
    %v562 = vand.u32 %v561, 4294901760
    %563 = vmatmul.mubr.f32.gmra.mrb[0].mxu0 %v562
    %v564 = vpop.f32.mrb[0].mxu0
    %v565 = vadd.f32 0.0, %v564
    %v566 = vpop.f32.mrb[0].mxu0
    %567 = vdwg.mxu0
    %568 = vmatprep.subr.mxu0 0.0
    %v569 = vand.u32 %v490, 4294901760
    %v570 = vsub.f32 %v490, %v569
    %v571 = vand.u32 %v570, 4294901760
    %v572 = vsub.f32 %v570, %v571
    %v573 = vand.u32 %v572, 4294901760
    %574 = vmatpush1.xpose.msra.mxu0 %v573
    %575 = vmatprep.subr.mxu0 0.0
    %576 = vmatpush1.xpose.msra.mxu0 0.0
    %577 = vmatprep.subr.mxu0 0.0
    %578 = vmatpush1.xpose.msra.mxu0 0.0
    %579 = vmatprep.subr.mxu0 0.0
    %580 = vmatpush1.xpose.msra.mxu0 0.0
    %581 = vmatprep.subr.mxu0 0.0
    %582 = vmatpush1.xpose.msra.mxu0 0.0
    %583 = vmatprep.subr.mxu0 0.0
    %584 = vmatpush1.xpose.msra.mxu0 0.0
    %585 = vmatprep.subr.mxu0 0.0
    %586 = vmatpush1.xpose.msra.mxu0 0.0
    %587 = vmatprep.subr.mxu0 0.0
    %588 = vmatpush1.xpose.msra.mxu0 0.0
    %589 = vmatprep.subr.mxu0 0.0
    %590 = vmatpush1.xpose.msra.mxu0 0.0
    %591 = vmatprep.subr.mxu0 0.0
    %592 = vmatpush1.xpose.msra.mxu0 0.0
    %593 = vmatprep.subr.mxu0 0.0
    %594 = vmatpush1.xpose.msra.mxu0 0.0
    %595 = vmatprep.subr.mxu0 0.0
    %596 = vmatpush1.xpose.msra.mxu0 0.0
    %597 = vmatprep.subr.mxu0 0.0
    %598 = vmatpush1.xpose.msra.mxu0 0.0
    %599 = vmatprep.subr.mxu0 0.0
    %600 = vmatpush1.xpose.msra.mxu0 0.0
    %601 = vmatprep.subr.mxu0 0.0
    %602 = vmatpush1.xpose.msra.mxu0 0.0
    %603 = vmatprep.subr.mxu0 0.0
    %604 = vmatpush1.xpose.msra.mxu0 0.0
    %605 = vmatprep.subr.mxu0 0.0
    %606 = vmatpush1.xpose.msra.mxu0 0.0
    %607 = vmatprep.subr.mxu0 0.0
    %608 = vmatpush1.xpose.msra.mxu0 0.0
    %609 = vmatprep.subr.mxu0 0.0
    %610 = vmatpush1.xpose.msra.mxu0 0.0
    %611 = vmatprep.subr.mxu0 0.0
    %612 = vmatpush1.xpose.msra.mxu0 0.0
    %613 = vmatprep.subr.mxu0 0.0
    %614 = vmatpush1.xpose.msra.mxu0 0.0
    %615 = vmatprep.subr.mxu0 0.0
    %616 = vmatpush1.xpose.msra.mxu0 0.0
    %617 = vmatprep.subr.mxu0 0.0
    %618 = vmatpush1.xpose.msra.mxu0 0.0
    %619 = vmatprep.subr.mxu0 0.0
    %620 = vmatpush1.xpose.msra.mxu0 0.0
    %621 = vmatprep.subr.mxu0 0.0
    %622 = vmatpush1.xpose.msra.mxu0 0.0
    %623 = vmatprep.subr.mxu0 0.0
    %624 = vmatpush1.xpose.msra.mxu0 0.0
    %625 = vmatprep.subr.mxu0 0.0
    %626 = vmatpush1.xpose.msra.mxu0 0.0
    %627 = vmatprep.subr.mxu0 0.0
    %628 = vmatpush1.xpose.msra.mxu0 0.0
    %629 = vmatprep.subr.mxu0 0.0
    %630 = vmatpush1.xpose.msra.mxu0 0.0
    %631 = vmatprep.subr.mxu0 0.0
    %632 = vmatpush1.xpose.msra.mxu0 0.0
    %633 = vmatprep.subr.mxu0 0.0
    %634 = vmatpush1.xpose.msra.mxu0 0.0
    %635 = vmatprep.subr.mxu0 0.0
    %636 = vmatpush1.xpose.msra.mxu0 0.0
    %637 = vmatprep.mubr.f32.mxu0 0.0
    %v638 = vand.u32 %v487, 4294901760
    %639 = vmatmul.mubr.f32.gmra.mrb[0].mxu0 %v638
    %v640 = vpop.f32.mrb[0].mxu0
    %v641 = vadd.f32 %v565, %v640
    %v642 = vpop.f32.mrb[0].mxu0
    %643 = vdwg.mxu0
    %644 = vmatprep.subr.mxu0 0.0
    %v645 = vand.u32 %v490, 4294901760
    %v646 = vsub.f32 %v490, %v645
    %647 = vmatpush1.xpose.msra.mxu0 %v646
    %648 = vmatprep.subr.mxu0 0.0
    %649 = vmatpush1.xpose.msra.mxu0 0.0
    %650 = vmatprep.subr.mxu0 0.0
    %651 = vmatpush1.xpose.msra.mxu0 0.0
    %652 = vmatprep.subr.mxu0 0.0
    %653 = vmatpush1.xpose.msra.mxu0 0.0
    %654 = vmatprep.subr.mxu0 0.0
    %655 = vmatpush1.xpose.msra.mxu0 0.0
    %656 = vmatprep.subr.mxu0 0.0
    %657 = vmatpush1.xpose.msra.mxu0 0.0
    %658 = vmatprep.subr.mxu0 0.0
    %659 = vmatpush1.xpose.msra.mxu0 0.0
    %660 = vmatprep.subr.mxu0 0.0
    %661 = vmatpush1.xpose.msra.mxu0 0.0
    %662 = vmatprep.subr.mxu0 0.0
    %663 = vmatpush1.xpose.msra.mxu0 0.0
    %664 = vmatprep.subr.mxu0 0.0
    %665 = vmatpush1.xpose.msra.mxu0 0.0
    %666 = vmatprep.subr.mxu0 0.0
    %667 = vmatpush1.xpose.msra.mxu0 0.0
    %668 = vmatprep.subr.mxu0 0.0
    %669 = vmatpush1.xpose.msra.mxu0 0.0
    %670 = vmatprep.subr.mxu0 0.0
    %671 = vmatpush1.xpose.msra.mxu0 0.0
    %672 = vmatprep.subr.mxu0 0.0
    %673 = vmatpush1.xpose.msra.mxu0 0.0
    %674 = vmatprep.subr.mxu0 0.0
    %675 = vmatpush1.xpose.msra.mxu0 0.0
    %676 = vmatprep.subr.mxu0 0.0
    %677 = vmatpush1.xpose.msra.mxu0 0.0
    %678 = vmatprep.subr.mxu0 0.0
    %679 = vmatpush1.xpose.msra.mxu0 0.0
    %680 = vmatprep.subr.mxu0 0.0
    %681 = vmatpush1.xpose.msra.mxu0 0.0
    %682 = vmatprep.subr.mxu0 0.0
    %683 = vmatpush1.xpose.msra.mxu0 0.0
    %684 = vmatprep.subr.mxu0 0.0
    %685 = vmatpush1.xpose.msra.mxu0 0.0
    %686 = vmatprep.subr.mxu0 0.0
    %687 = vmatpush1.xpose.msra.mxu0 0.0
    %688 = vmatprep.subr.mxu0 0.0
    %689 = vmatpush1.xpose.msra.mxu0 0.0
    %690 = vmatprep.subr.mxu0 0.0
    %691 = vmatpush1.xpose.msra.mxu0 0.0
    %692 = vmatprep.subr.mxu0 0.0
    %693 = vmatpush1.xpose.msra.mxu0 0.0
    %694 = vmatprep.subr.mxu0 0.0
    %695 = vmatpush1.xpose.msra.mxu0 0.0
    %696 = vmatprep.subr.mxu0 0.0
    %697 = vmatpush1.xpose.msra.mxu0 0.0
    %698 = vmatprep.subr.mxu0 0.0
    %699 = vmatpush1.xpose.msra.mxu0 0.0
    %700 = vmatprep.subr.mxu0 0.0
    %701 = vmatpush1.xpose.msra.mxu0 0.0
    %702 = vmatprep.subr.mxu0 0.0
    %703 = vmatpush1.xpose.msra.mxu0 0.0
    %704 = vmatprep.subr.mxu0 0.0
    %705 = vmatpush1.xpose.msra.mxu0 0.0
    %706 = vmatprep.subr.mxu0 0.0
    %707 = vmatpush1.xpose.msra.mxu0 0.0
    %708 = vmatprep.subr.mxu0 0.0
    %709 = vmatpush1.xpose.msra.mxu0 0.0
    %710 = vmatprep.mubr.f32.mxu0 0.0
    %v711 = vand.u32 %v487, 4294901760
    %v712 = vsub.f32 %v487, %v711
    %713 = vmatmul.mubr.f32.gmra.mrb[0].mxu0 %v712
    %v714 = vpop.f32.mrb[0].mxu0
    %v715 = vadd.f32 %v641, %v714
    %v716 = vpop.f32.mrb[0].mxu0
    %717 = vdwg.mxu0
    %718 = vmatprep.subr.mxu0 0.0
    %v719 = vand.u32 %v490, 4294901760
    %720 = vmatpush1.xpose.msra.mxu0 %v719
    %721 = vmatprep.subr.mxu0 0.0
    %722 = vmatpush1.xpose.msra.mxu0 0.0
    %723 = vmatprep.subr.mxu0 0.0
    %724 = vmatpush1.xpose.msra.mxu0 0.0
    %725 = vmatprep.subr.mxu0 0.0
    %726 = vmatpush1.xpose.msra.mxu0 0.0
    %727 = vmatprep.subr.mxu0 0.0
    %728 = vmatpush1.xpose.msra.mxu0 0.0
    %729 = vmatprep.subr.mxu0 0.0
    %730 = vmatpush1.xpose.msra.mxu0 0.0
    %731 = vmatprep.subr.mxu0 0.0
    %732 = vmatpush1.xpose.msra.mxu0 0.0
    %733 = vmatprep.subr.mxu0 0.0
    %734 = vmatpush1.xpose.msra.mxu0 0.0
    %735 = vmatprep.subr.mxu0 0.0
    %736 = vmatpush1.xpose.msra.mxu0 0.0
    %737 = vmatprep.subr.mxu0 0.0
    %738 = vmatpush1.xpose.msra.mxu0 0.0
    %739 = vmatprep.subr.mxu0 0.0
    %740 = vmatpush1.xpose.msra.mxu0 0.0
    %741 = vmatprep.subr.mxu0 0.0
    %742 = vmatpush1.xpose.msra.mxu0 0.0
    %743 = vmatprep.subr.mxu0 0.0
    %744 = vmatpush1.xpose.msra.mxu0 0.0
    %745 = vmatprep.subr.mxu0 0.0
    %746 = vmatpush1.xpose.msra.mxu0 0.0
    %747 = vmatprep.subr.mxu0 0.0
    %748 = vmatpush1.xpose.msra.mxu0 0.0
    %749 = vmatprep.subr.mxu0 0.0
    %750 = vmatpush1.xpose.msra.mxu0 0.0
    %751 = vmatprep.subr.mxu0 0.0
    %752 = vmatpush1.xpose.msra.mxu0 0.0
    %753 = vmatprep.subr.mxu0 0.0
    %754 = vmatpush1.xpose.msra.mxu0 0.0
    %755 = vmatprep.subr.mxu0 0.0
    %756 = vmatpush1.xpose.msra.mxu0 0.0
    %757 = vmatprep.subr.mxu0 0.0
    %758 = vmatpush1.xpose.msra.mxu0 0.0
    %759 = vmatprep.subr.mxu0 0.0
    %760 = vmatpush1.xpose.msra.mxu0 0.0
    %761 = vmatprep.subr.mxu0 0.0
    %762 = vmatpush1.xpose.msra.mxu0 0.0
    %763 = vmatprep.subr.mxu0 0.0
    %764 = vmatpush1.xpose.msra.mxu0 0.0
    %765 = vmatprep.subr.mxu0 0.0
    %766 = vmatpush1.xpose.msra.mxu0 0.0
    %767 = vmatprep.subr.mxu0 0.0
    %768 = vmatpush1.xpose.msra.mxu0 0.0
    %769 = vmatprep.subr.mxu0 0.0
    %770 = vmatpush1.xpose.msra.mxu0 0.0
    %771 = vmatprep.subr.mxu0 0.0
    %772 = vmatpush1.xpose.msra.mxu0 0.0
    %773 = vmatprep.subr.mxu0 0.0
    %774 = vmatpush1.xpose.msra.mxu0 0.0
    %775 = vmatprep.subr.mxu0 0.0
    %776 = vmatpush1.xpose.msra.mxu0 0.0
    %777 = vmatprep.subr.mxu0 0.0
    %778 = vmatpush1.xpose.msra.mxu0 0.0
    %779 = vmatprep.subr.mxu0 0.0
    %780 = vmatpush1.xpose.msra.mxu0 0.0
    %781 = vmatprep.subr.mxu0 0.0
    %782 = vmatpush1.xpose.msra.mxu0 0.0
    %783 = vmatprep.mubr.f32.mxu0 0.0
    %v784 = vand.u32 %v487, 4294901760
    %v785 = vsub.f32 %v487, %v784
    %v786 = vand.u32 %v785, 4294901760
    %787 = vmatmul.mubr.f32.gmra.mrb[0].mxu0 %v786
    %v788 = vpop.f32.mrb[0].mxu0
    %v789 = vadd.f32 %v715, %v788
    %v790 = vpop.f32.mrb[0].mxu0
    %791 = vdwg.mxu0
    %792 = vmatprep.subr.mxu0 0.0
    %v793 = vand.u32 %v490, 4294901760
    %v794 = vsub.f32 %v490, %v793
    %v795 = vand.u32 %v794, 4294901760
    %796 = vmatpush1.xpose.msra.mxu0 %v795
    %797 = vmatprep.subr.mxu0 0.0
    %798 = vmatpush1.xpose.msra.mxu0 0.0
    %799 = vmatprep.subr.mxu0 0.0
    %800 = vmatpush1.xpose.msra.mxu0 0.0
    %801 = vmatprep.subr.mxu0 0.0
    %802 = vmatpush1.xpose.msra.mxu0 0.0
    %803 = vmatprep.subr.mxu0 0.0
    %804 = vmatpush1.xpose.msra.mxu0 0.0
    %805 = vmatprep.subr.mxu0 0.0
    %806 = vmatpush1.xpose.msra.mxu0 0.0
    %807 = vmatprep.subr.mxu0 0.0
    %808 = vmatpush1.xpose.msra.mxu0 0.0
    %809 = vmatprep.subr.mxu0 0.0
    %810 = vmatpush1.xpose.msra.mxu0 0.0
    %811 = vmatprep.subr.mxu0 0.0
    %812 = vmatpush1.xpose.msra.mxu0 0.0
    %813 = vmatprep.subr.mxu0 0.0
    %814 = vmatpush1.xpose.msra.mxu0 0.0
    %815 = vmatprep.subr.mxu0 0.0
    %816 = vmatpush1.xpose.msra.mxu0 0.0
    %817 = vmatprep.subr.mxu0 0.0
    %818 = vmatpush1.xpose.msra.mxu0 0.0
    %819 = vmatprep.subr.mxu0 0.0
    %820 = vmatpush1.xpose.msra.mxu0 0.0
    %821 = vmatprep.subr.mxu0 0.0
    %822 = vmatpush1.xpose.msra.mxu0 0.0
    %823 = vmatprep.subr.mxu0 0.0
    %824 = vmatpush1.xpose.msra.mxu0 0.0
    %825 = vmatprep.subr.mxu0 0.0
    %826 = vmatpush1.xpose.msra.mxu0 0.0
    %827 = vmatprep.subr.mxu0 0.0
    %828 = vmatpush1.xpose.msra.mxu0 0.0
    %829 = vmatprep.subr.mxu0 0.0
    %830 = vmatpush1.xpose.msra.mxu0 0.0
    %831 = vmatprep.subr.mxu0 0.0
    %832 = vmatpush1.xpose.msra.mxu0 0.0
    %833 = vmatprep.subr.mxu0 0.0
    %834 = vmatpush1.xpose.msra.mxu0 0.0
    %835 = vmatprep.subr.mxu0 0.0
    %836 = vmatpush1.xpose.msra.mxu0 0.0
    %837 = vmatprep.subr.mxu0 0.0
    %838 = vmatpush1.xpose.msra.mxu0 0.0
    %839 = vmatprep.subr.mxu0 0.0
    %840 = vmatpush1.xpose.msra.mxu0 0.0
    %841 = vmatprep.subr.mxu0 0.0
    %842 = vmatpush1.xpose.msra.mxu0 0.0
    %843 = vmatprep.subr.mxu0 0.0
    %844 = vmatpush1.xpose.msra.mxu0 0.0
    %845 = vmatprep.subr.mxu0 0.0
    %846 = vmatpush1.xpose.msra.mxu0 0.0
    %847 = vmatprep.subr.mxu0 0.0
    %848 = vmatpush1.xpose.msra.mxu0 0.0
    %849 = vmatprep.subr.mxu0 0.0
    %850 = vmatpush1.xpose.msra.mxu0 0.0
    %851 = vmatprep.subr.mxu0 0.0
    %852 = vmatpush1.xpose.msra.mxu0 0.0
    %853 = vmatprep.subr.mxu0 0.0
    %854 = vmatpush1.xpose.msra.mxu0 0.0
    %855 = vmatprep.subr.mxu0 0.0
    %856 = vmatpush1.xpose.msra.mxu0 0.0
    %857 = vmatprep.subr.mxu0 0.0
    %858 = vmatpush1.xpose.msra.mxu0 0.0
    %859 = vmatprep.mubr.f32.mxu0 0.0
    %v860 = vand.u32 %v487, 4294901760
    %861 = vmatmul.mubr.f32.gmra.mrb[0].mxu0 %v860
    %v862 = vpop.f32.mrb[0].mxu0
    %v863 = vadd.f32 %v789, %v862
    %v864 = vpop.f32.mrb[0].mxu0
    %865 = vdwg.mxu0
    %866 = vmatprep.subr.mxu0 0.0
    %v867 = vand.u32 %v490, 4294901760
    %868 = vmatpush1.xpose.msra.mxu0 %v867
    %869 = vmatprep.subr.mxu0 0.0
    %870 = vmatpush1.xpose.msra.mxu0 0.0
    %871 = vmatprep.subr.mxu0 0.0
    %872 = vmatpush1.xpose.msra.mxu0 0.0
    %873 = vmatprep.subr.mxu0 0.0
    %874 = vmatpush1.xpose.msra.mxu0 0.0
    %875 = vmatprep.subr.mxu0 0.0
    %876 = vmatpush1.xpose.msra.mxu0 0.0
    %877 = vmatprep.subr.mxu0 0.0
    %878 = vmatpush1.xpose.msra.mxu0 0.0
    %879 = vmatprep.subr.mxu0 0.0
    %880 = vmatpush1.xpose.msra.mxu0 0.0
    %881 = vmatprep.subr.mxu0 0.0
    %882 = vmatpush1.xpose.msra.mxu0 0.0
    %883 = vmatprep.subr.mxu0 0.0
    %884 = vmatpush1.xpose.msra.mxu0 0.0
    %885 = vmatprep.subr.mxu0 0.0
    %886 = vmatpush1.xpose.msra.mxu0 0.0
    %887 = vmatprep.subr.mxu0 0.0
    %888 = vmatpush1.xpose.msra.mxu0 0.0
    %889 = vmatprep.subr.mxu0 0.0
    %890 = vmatpush1.xpose.msra.mxu0 0.0
    %891 = vmatprep.subr.mxu0 0.0
    %892 = vmatpush1.xpose.msra.mxu0 0.0
    %893 = vmatprep.subr.mxu0 0.0
    %894 = vmatpush1.xpose.msra.mxu0 0.0
    %895 = vmatprep.subr.mxu0 0.0
    %896 = vmatpush1.xpose.msra.mxu0 0.0
    %897 = vmatprep.subr.mxu0 0.0
    %898 = vmatpush1.xpose.msra.mxu0 0.0
    %899 = vmatprep.subr.mxu0 0.0
    %900 = vmatpush1.xpose.msra.mxu0 0.0
    %901 = vmatprep.subr.mxu0 0.0
    %902 = vmatpush1.xpose.msra.mxu0 0.0
    %903 = vmatprep.subr.mxu0 0.0
    %904 = vmatpush1.xpose.msra.mxu0 0.0
    %905 = vmatprep.subr.mxu0 0.0
    %906 = vmatpush1.xpose.msra.mxu0 0.0
    %907 = vmatprep.subr.mxu0 0.0
    %908 = vmatpush1.xpose.msra.mxu0 0.0
    %909 = vmatprep.subr.mxu0 0.0
    %910 = vmatpush1.xpose.msra.mxu0 0.0
    %911 = vmatprep.subr.mxu0 0.0
    %912 = vmatpush1.xpose.msra.mxu0 0.0
    %913 = vmatprep.subr.mxu0 0.0
    %914 = vmatpush1.xpose.msra.mxu0 0.0
    %915 = vmatprep.subr.mxu0 0.0
    %916 = vmatpush1.xpose.msra.mxu0 0.0
    %917 = vmatprep.subr.mxu0 0.0
    %918 = vmatpush1.xpose.msra.mxu0 0.0
    %919 = vmatprep.subr.mxu0 0.0
    %920 = vmatpush1.xpose.msra.mxu0 0.0
    %921 = vmatprep.subr.mxu0 0.0
    %922 = vmatpush1.xpose.msra.mxu0 0.0
    %923 = vmatprep.subr.mxu0 0.0
    %924 = vmatpush1.xpose.msra.mxu0 0.0
    %925 = vmatprep.subr.mxu0 0.0
    %926 = vmatpush1.xpose.msra.mxu0 0.0
    %927 = vmatprep.subr.mxu0 0.0
    %928 = vmatpush1.xpose.msra.mxu0 0.0
    %929 = vmatprep.subr.mxu0 0.0
    %930 = vmatpush1.xpose.msra.mxu0 0.0
    %931 = vmatprep.mubr.f32.mxu0 0.0
    %v932 = vand.u32 %v487, 4294901760
    %933 = vmatmul.mubr.f32.gmra.mrb[0].mxu0 %v932
    %v934 = vpop.f32.mrb[0].mxu0
    %v935 = vadd.f32 %v863, %v934
    %v936 = vpop.f32.mrb[0].mxu0
    %937 = vdwg.mxu0
    %v938 = vld [vmem:[%s1] sm:$0x3]
    %940 = vset.pattern.permute.xlu0 0
    %941 = vperm.xlu0 %940, %v938
    %v942 = vpop.permute.xlu0 %941
    %v943 = vrot.slane %v942, 1
    %v946 = vadd.f32 %v483, %v942
    %v947 = vadd.f32 %v935, %v943
    %vm948 = vcmask 57344
    %v949 = vsel %vm948, %v946, -inf
    %v950 = vsel %vm948, %v947, -inf
    %v951 = vmax.f32 %v949, %v950
    %v952 = vlaneseq
    %v953 = vshrl.u32 %v952, 7
    %v954 = vsub.s32 0, %v953
    %v955 = vrot.slane %v951, %v954
    %v956 = vsub.f32 %v946, %v955
    %v957 = vsub.f32 %v947, %v955
    %v958 = vmul.f32 %v956, 1.442695
    %v959 = vpow.pop %v958
    %v960 = vmul.f32 %v957, 1.442695
    %v961 = vpow.pop %v960
    %v964 = vrot.slane %v961, 7
    %vm965 = vcmask 1041409
    %v966 = vsel %vm965, %v964, %v959
    %vm968 = vcmask 58368
    %v969 = vsel %vm968, %v966, 0.0
    %v970 = vrot.slane %v969, 4
    %v971 = vadd.f32 %v969, %v970
    %v972 = vrot.slane %v971, 2
    %v973 = vadd.f32 %v971, %v972
    %v974 = vrot.slane %v973, 1
    %v975 = vadd.f32 %v973, %v974
    %v976 = vrcp.pop %v975
    %v977 = vlaneseq
    %v978 = vshrl.u32 %v977, 7
    %v979 = vsub.s32 0, %v978
    %v980 = vrot.slane %v976, %v979
    %v981 = vmul.f32 %v959, %v980
    %v982 = vmul.f32 %v961, %v980
    %v985 = vrot.slane %v982, 7
    %v986 = vsel %vm965, %v985, %v981
    %988 = vst.msk [vmem:[#allocation5] sm:$0x3] %vm968, %v986
    // Predicated region
    $region18: #{tpu_custom_call.1} parent=1 // pred_check
      _
    $region19: #{tpu_custom_call.1} parent=1 // pred_check_branch
      %990 = sbr.rel (0) target = $region21
    $region20: #{tpu_custom_call.1} parent=1 // pred_region
      %s992 = ssub.s32 32, 32
      %993 = vsyncadd [#allocation4], %s992
      %s995 = sshll.u32 [#allocation5], 4
      %s996 = int_to_ptr.vmem [resolvable:$true] %s995
      %998 = dma.vmem_to_hbm [thread:$0]  %s996, 32, %s3, [#allocation4]
    $region21: #{tpu_custom_call.1} parent=1 // pred_fallthru
      _
    // Predicated region
    $region22: #{tpu_custom_call.1} parent=1 // pred_check
      _
    $region23: #{tpu_custom_call.1} parent=1 // pred_check_branch
      %1000 = sbr.rel (0) target = $region25
    $region24: #{tpu_custom_call.1} parent=1 // pred_region
      %1001 = dma.done [#allocation4], 32
    $region25: #{tpu_custom_call.1} parent=1 // pred_fallthru
      _
    %1002 = vsyncpa [#allocation3], 1
    %1003 = vsyncpa [#allocation4], 1

</llo_original>
